<compile_context>
chip_gen: v7x
topology: tpu7x:2x2x1
jax: 0.10.0
libtpu: 0.0.40
codegen_flags: <defaults>
</compile_context>

<pallas_src>
import functools

import jax
import jax.numpy as jnp
from jax.experimental import pallas as pl
from jax.experimental.pallas import tpu as pltpu

GAMMA = 1.5
ALPHA = 0.25

_LANES = 128
_MAX_BLOCK_ROWS = 2048   # 2048x128 f32 = 1 MiB per stream buffer


def _round_up(x, m):
    return ((x + m - 1) // m) * m


def _min_sublane_rows(dtype):
    # Minimum second-minor tile per dtype: f32 -> 8, bf16 -> 16, int8/bool -> 32.
    return {4: 8, 2: 16, 1: 32}.get(jnp.dtype(dtype).itemsize, 8)


def _num_tensorcores():
    """Best-effort TensorCores-per-chip (2 on v7x / megacore parts).

    Returns 1 on any doubt so single-TC chips never see a CORE_PARALLEL axis.
    """
    try:
        info = pltpu.get_tpu_info()
    except Exception:
        return 1
    for name in ("num_cores", "core_count", "num_tensorcores", "tensorcore_count"):
        v = getattr(info, name, None)
        if isinstance(v, int) and v > 1:
            return 2          # kernel implements a 2-way core split only
    return 1


def _focal_loss_kernel(pred_ref, true_ref, out_ref, *, gamma, alpha, steps,
                       total_blocks, block_rows, n_valid, mask_tail,
                       has_phantom, hard_labels):
    c = pl.program_id(0)          # core-split axis (CORE_PARALLEL on 2-TC chips)
    j = pl.program_id(1)          # reduction axis ("arbitrary")
    b = c * steps + j             # logical row-block index

    @pl.when(j == 0)
    def _init():
        out_ref[...] = jnp.zeros_like(out_ref)

    def _accumulate():
        x = pred_ref[...].astype(jnp.float32)
        z = true_ref[...].astype(jnp.float32)

        if hard_labels:
            # Targets guaranteed in {0,1}: s = (2z-1)*x; one exp + one log1p.
            s = jnp.where(z >= 0.5, x, -x)
            e = jnp.exp(-jnp.abs(s))
            inv = pl.reciprocal(1.0 + e, approx=True)         # EUP slot, VALU-free
            bce = jnp.maximum(-s, 0.0) + jnp.log1p(e)          # softplus(-s)
            one_m_pt = jnp.where(s <= 0.0, inv, e * inv)       # sigmoid(-s) = 1 - p_t
        else:
            # Numerically stable BCE-with-logits; exp(-|x|) shared with sigmoid.
            e = jnp.exp(-jnp.abs(x))
            inv = pl.reciprocal(1.0 + e, approx=True)          # EUP slot, VALU-free
            bce = jnp.maximum(x, 0.0) - x * z + jnp.log1p(e)
            p = jnp.where(x >= 0.0, inv, e * inv)              # sigmoid(x)
            # 1 - p_t = p + z - 2*z*p   (exact algebraic fold; soft targets OK)
            one_m_pt = jnp.maximum(p + z - 2.0 * (z * p), 0.0)

        # alpha_f = z*alpha + (1-z)*(1-alpha) = (1-alpha) + (2*alpha-1)*z
        alpha_f = (1.0 - alpha) + (2.0 * alpha - 1.0) * z

        if gamma == 1.5:
            mod = one_m_pt * jnp.sqrt(one_m_pt)                # no log/exp power
        elif gamma == 2.0:
            mod = one_m_pt * one_m_pt
        elif gamma == 1.0:
            mod = one_m_pt
        elif gamma == 0.0:
            mod = jnp.ones_like(one_m_pt)
        else:
            mod = jnp.power(one_m_pt, gamma)

        contrib = bce * alpha_f * mod

        def _partial(v):
            # Sublane-aligned (8,128) partial sum: same VPU add count as a full
            # block accumulator but no (block_rows,128) VMEM read-modify-write.
            return v.reshape(-1, 8, _LANES).sum(axis=0)

        if mask_tail:
            @pl.when(b != total_blocks - 1)
            def _bulk():
                out_ref[...] += _partial(contrib)

            @pl.when(b == total_blocks - 1)
            def _tail():
                # Mask the ragged tail: covers both the tiny wrapper pad (when
                # numel % 128 != 0) and Pallas edge-block garbage rows.
                r = jax.lax.broadcasted_iota(jnp.int32, contrib.shape, 0)
                l = jax.lax.broadcasted_iota(jnp.int32, contrib.shape, 1)
                gidx = (b * block_rows + r) * _LANES + l
                out_ref[...] += _partial(jnp.where(gidx < n_valid, contrib, 0.0))
        else:
            out_ref[...] += _partial(contrib)

    if has_phantom:
        pl.when(b < total_blocks)(_accumulate)   # skip phantom blocks (odd split)
    else:
        _accumulate()


def focal_loss(pred, true, gamma=GAMMA, alpha=ALPHA, reduction="mean",
               hard_labels=False, num_cores=None):
    """Focal loss (BCEWithLogits base). pred/true: same shape, any rank.

    reduction: 'mean' (default) or 'sum'.
    hard_labels: opt-in fast path, valid only when `true` is exactly 0/1.
    """
    assert pred.shape == true.shape
    assert isinstance(gamma, (int, float)) and isinstance(alpha, (int, float)), (
        "gamma/alpha must be static Python numbers")
    assert reduction in ("mean", "sum")
    # TODO(synk): reduction='none' (elementwise output) is not implemented.

    n = pred.size
    n_rows = pl.cdiv(n, _LANES)
    row_align = max(_min_sublane_rows(pred.dtype), _min_sublane_rows(true.dtype))

    if n_rows <= _MAX_BLOCK_ROWS:
        rows = _round_up(n_rows, row_align)      # single block covers everything
        block_rows = rows
    else:
        block_rows = _MAX_BLOCK_ROWS             # multiple of 32: OK for any dtype
        rows = n_rows                            # ragged edge handled in-kernel

    total_blocks = pl.cdiv(rows, block_rows)

    ncores = int(num_cores) if num_cores is not None else _num_tensorcores()
    ncores = max(1, min(2, ncores))
    if total_blocks < 2:
        ncores = 1                               # avoid phantom-block DMA
    steps = pl.cdiv(total_blocks, ncores)
    has_phantom = ncores * steps != total_blocks
    mask_tail = total_blocks * block_rows * _LANES != n

    def to_2d(a):
        flat = a.reshape(-1)
        pad = rows * _LANES - n
        if pad:
            # Pad only to the next row multiple; padded elements are masked
            # in-kernel so the pad value is irrelevant.  For common sizes
            # (numel % 128 == 0, non-tiny) this branch never runs -> no copy.
            flat = jnp.pad(flat, (0, pad))
        return flat.reshape(rows, _LANES)

    pred2d = to_2d(pred)
    true2d = to_2d(true)

    def idx_map(c, j):
        # Clamp phantom blocks to the last real one; skipped in-kernel.
        return (jnp.minimum(c * steps + j, total_blocks - 1), 0)

    in_spec = pl.BlockSpec((block_rows, _LANES), idx_map)
    dim0 = pltpu.CORE_PARALLEL if ncores > 1 else pltpu.ARBITRARY

    kernel = functools.partial(
        _focal_loss_kernel, gamma=float(gamma), alpha=float(alpha), steps=steps,
        total_blocks=total_blocks, block_rows=block_rows, n_valid=n,
        mask_tail=mask_tail, has_phantom=has_phantom, hard_labels=hard_labels)

    partials = pl.pallas_call(
        kernel,
        out_shape=jax.ShapeDtypeStruct((ncores * 8, _LANES), jnp.float32),
        grid_spec=pltpu.PrefetchScalarGridSpec(
            num_scalar_prefetch=0,
            grid=(ncores, steps),
            in_specs=[in_spec, in_spec],
            out_specs=pl.BlockSpec((8, _LANES), lambda c, j: (c, 0)),
        ),
        compiler_params=pltpu.CompilerParams(
            dimension_semantics=(dim0, pltpu.ARBITRARY)),
    )(pred2d, true2d)

    total = jnp.sum(partials)
    if reduction == "mean":
        return total / jnp.float32(n)
    return total


def _reference_focal_loss(pred, true, gamma=GAMMA, alpha=ALPHA):
    x = pred.astype(jnp.float32)
    z = true.astype(jnp.float32)
    bce = jnp.maximum(x, 0.0) - x * z + jnp.log1p(jnp.exp(-jnp.abs(x)))
    p = jax.nn.sigmoid(x)
    p_t = z * p + (1 - z) * (1 - p)
    af = z * alpha + (1 - z) * (1 - alpha)
    mf = jnp.power(1.0 - p_t, gamma)
    return jnp.mean(bce * af * mf)


if __name__ == "__main__":
    key = jax.random.PRNGKey(0)

    # Cases: exact single block / ragged unaligned tail / multi-block edge block.
    shapes = [(2, 4, 16, 16), (3, 5, 7, 11), (2, 4, 256, 160)]
    for idx, shape in enumerate(shapes):
        k1, k2 = jax.random.split(jax.random.fold_in(key, idx))
        pred = jax.random.normal(k1, shape, dtype=jnp.float32) * 2.0
        true = (jax.random.uniform(k2, shape) > 0.5).astype(jnp.float32)

        out = jax.block_until_ready(focal_loss(pred, true))
        ref = _reference_focal_loss(pred, true)
        # approx-reciprocal sigmoid -> slightly looser tolerance than exact math
        assert jnp.allclose(out, ref, rtol=5e-3, atol=1e-6), (shape, out, ref)

        if idx == 0:
            # opt-in hard-label fast path (targets here are exactly 0/1)
            out_h = jax.block_until_ready(focal_loss(pred, true, hard_labels=True))
            assert jnp.allclose(out_h, ref, rtol=5e-3, atol=1e-6), (shape, out_h, ref)

    print("KERNEL_OK")
</pallas_src>

<mosaic_0001>
module attributes {stable_mosaic.version = 11 : i64} {
  func.func @_focal_loss_kernel(%arg0: i32, %arg1: i32, %arg2: memref<16x128xf32, #tpu.memory_space<vmem>>, %arg3: memref<16x128xf32, #tpu.memory_space<vmem>>, %arg4: memref<8x128xf32, #tpu.memory_space<vmem>>) attributes {dimension_semantics = [#tpu.dimension_semantics<arbitrary>, #tpu.dimension_semantics<arbitrary>], iteration_bounds = array<i64: 1, 1>, scalar_prefetch = 0 : i64, scratch_operands = 0 : i64, tpu.core_type = #tpu.core_type<tc>, window_params = [{transform_indices = @transform_0, window_bounds = array<i64: 16, 128>}, {transform_indices = @transform_1, window_bounds = array<i64: 16, 128>}, {transform_indices = @transform_2, window_bounds = array<i64: 8, 128>}]} {
    %c0_i32 = arith.constant 0 : i32
    %0 = arith.cmpi eq, %arg1, %c0_i32 : i32
    %1 = arith.extui %0 : i1 to i32
    %c0_i32_0 = arith.constant 0 : i32
    %2 = arith.cmpi ne, %1, %c0_i32_0 : i32
    scf.if %2 {
      %cst_16 = arith.constant 0.000000e+00 : f32
      %42 = vector.broadcast %cst_16 : f32 to vector<8x128xf32>
      %c0_17 = arith.constant 0 : index
      %c0_18 = arith.constant 0 : index
      %43 = vector.load %arg4[%c0_17, %c0_18] : memref<8x128xf32, #tpu.memory_space<vmem>>, vector<8x128xf32>
      tpu.vector_store %arg4[%c0_17, %c0_18], %42 {strides = array<i32>} : memref<8x128xf32, #tpu.memory_space<vmem>>, vector<8x128xf32>,
    } else {
    }
    %c0 = arith.constant 0 : index
    %c0_1 = arith.constant 0 : index
    %3 = vector.load %arg2[%c0, %c0_1] : memref<16x128xf32, #tpu.memory_space<vmem>>, vector<16x128xf32>
    %c0_2 = arith.constant 0 : index
    %c0_3 = arith.constant 0 : index
    %4 = vector.load %arg3[%c0_2, %c0_3] : memref<16x128xf32, #tpu.memory_space<vmem>>, vector<16x128xf32>
    %5 = math.absf %3 : vector<16x128xf32>
    %cst = arith.constant 0.000000e+00 : f32
    %6 = vector.broadcast %cst : f32 to vector<16x128xf32>
    %7 = arith.subf %6, %5 : vector<16x128xf32>
    %8 = math.exp %7 : vector<16x128xf32>
    %cst_4 = arith.constant 1.000000e+00 : f32
    %9 = vector.broadcast %cst_4 : f32 to vector<16x128xf32>
    %10 = arith.addf %9, %8 : vector<16x128xf32>
    %11 = tpu.reciprocal %10 {approx = true} : vector<16x128xf32> -> vector<16x128xf32>
    %cst_5 = arith.constant 0.000000e+00 : f32
    %12 = vector.broadcast %cst_5 : f32 to vector<16x128xf32>
    %13 = arith.maximumf %3, %12 : vector<16x128xf32>
    %14 = arith.mulf %3, %4 : vector<16x128xf32>
    %15 = arith.subf %13, %14 : vector<16x128xf32>
    %16 = math.log1p %8 : vector<16x128xf32>
    %17 = arith.addf %15, %16 : vector<16x128xf32>
    %cst_6 = arith.constant 0.000000e+00 : f32
    %18 = vector.broadcast %cst_6 : f32 to vector<16x128xf32>
    %19 = arith.cmpf oge, %3, %18 : vector<16x128xf32>
    %20 = arith.mulf %8, %11 : vector<16x128xf32>
    %21 = arith.select %19, %11, %20 : vector<16x128xi1>, vector<16x128xf32>
    %22 = arith.addf %21, %4 : vector<16x128xf32>
    %23 = arith.mulf %4, %21 : vector<16x128xf32>
    %cst_7 = arith.constant 2.000000e+00 : f32
    %24 = vector.broadcast %cst_7 : f32 to vector<16x128xf32>
    %25 = arith.mulf %24, %23 : vector<16x128xf32>
    %26 = arith.subf %22, %25 : vector<16x128xf32>
    %cst_8 = arith.constant 0.000000e+00 : f32
    %27 = vector.broadcast %cst_8 : f32 to vector<16x128xf32>
    %28 = arith.maximumf %26, %27 : vector<16x128xf32>
    %cst_9 = arith.constant -5.000000e-01 : f32
    %29 = vector.broadcast %cst_9 : f32 to vector<16x128xf32>
    %30 = arith.mulf %29, %4 : vector<16x128xf32>
    %cst_10 = arith.constant 7.500000e-01 : f32
    %31 = vector.broadcast %cst_10 : f32 to vector<16x128xf32>
    %32 = arith.addf %31, %30 : vector<16x128xf32>
    %33 = math.sqrt %28 : vector<16x128xf32>
    %34 = arith.mulf %28, %33 : vector<16x128xf32>
    %35 = arith.mulf %17, %32 : vector<16x128xf32>
    %36 = arith.mulf %35, %34 : vector<16x128xf32>
    %c0_11 = arith.constant 0 : index
    %c0_12 = arith.constant 0 : index
    %37 = vector.load %arg4[%c0_11, %c0_12] : memref<8x128xf32, #tpu.memory_space<vmem>>, vector<8x128xf32>
    %38 = vector.shape_cast %36 : vector<16x128xf32> to vector<2x8x128xf32>
    %cst_13 = arith.constant dense<0.000000e+00> : vector<8x128xf32>
    %39 = vector.multi_reduction <add>, %38, %cst_13 [0] : vector<2x8x128xf32> to vector<8x128xf32>
    %40 = arith.addf %37, %39 : vector<8x128xf32>
    %c0_14 = arith.constant 0 : index
    %c0_15 = arith.constant 0 : index
    %41 = vector.load %arg4[%c0_14, %c0_15] : memref<8x128xf32, #tpu.memory_space<vmem>>, vector<8x128xf32>
    tpu.vector_store %arg4[%c0_14, %c0_15], %40 {strides = array<i32>} : memref<8x128xf32, #tpu.memory_space<vmem>>, vector<8x128xf32>,
    return
  }
  func.func @transform_0(%arg0: i32, %arg1: i32) -> (i32, i32) {
    %c1_i32 = arith.constant 1 : i32
    %0 = arith.muli %arg0, %c1_i32 : i32
    %1 = arith.addi %0, %arg1 : i32
    %c0_i32 = arith.constant 0 : i32
    %2 = arith.minsi %1, %c0_i32 : i32
    %c0_i32_0 = arith.constant 0 : i32
    %c0_i32_1 = arith.constant 0 : i32
    return %2, %c0_i32_0 : i32, i32
  }
  func.func @transform_1(%arg0: i32, %arg1: i32) -> (i32, i32) {
    %c1_i32 = arith.constant 1 : i32
    %0 = arith.muli %arg0, %c1_i32 : i32
    %1 = arith.addi %0, %arg1 : i32
    %c0_i32 = arith.constant 0 : i32
    %2 = arith.minsi %1, %c0_i32 : i32
    %c0_i32_0 = arith.constant 0 : i32
    %c0_i32_1 = arith.constant 0 : i32
    return %2, %c0_i32_0 : i32, i32
  }
  func.func @transform_2(%arg0: i32, %arg1: i32) -> (i32, i32) {
    %c0_i32 = arith.constant 0 : i32
    %c0_i32_0 = arith.constant 0 : i32
    return %arg0, %c0_i32 : i32, i32
  }
}

</mosaic_0001>

<llo_original>
// kernel: tpu_custom_call.1
$region0: #{tpu_custom_call.1}
  #allocation0 [shape = 'u32[]', space=smem, size = 0x4, offset = 0x4, fixed_abs, tag = 'smem constant byte address 0x4 - core index']
  #allocation1 [shape = 'u32[144,128]{1,0:T(1,128)}', space=vmem, size = 0x12000, scoped, tag = 'internal scratch']
  %s0 = inlined_call_operand.hbm [shape: f32[16,128], index: 0, kind: input, shape index: {}]
  %s1 = inlined_call_operand.hbm [shape: f32[16,128], index: 1, kind: input, shape index: {}]
  %s2 = inlined_call_operand.hbm [shape: f32[8,128], index: 2, kind: output, shape index: {}]
  %s3 = sld [smem:[#allocation0]]
  $region30: #{tpu_custom_call.1} parent=0
    _
  %s5 = ssub.s32 1, %s3
  %s6 = scalar_select 0, %s5, %s3
  $region1: #{tpu_custom_call.1} parent=0
    #allocation2 [shape = 'u8[8192]{0}', space=vmem, size = 0x2000, scoped, tag = 'input window, operand 0, single buffered']
    #allocation3 [shape = 's32[1]{0}', space=sflag, size = 0x4, scoped, tag = 'scoped memory for tpu_custom_call.1']
    #allocation4 [shape = 's32[1]{0}', space=sflag, size = 0x4, scoped, tag = 'scoped memory for tpu_custom_call.1']
    #allocation5 [shape = 'u8[8192]{0}', space=vmem, size = 0x2000, scoped, tag = 'input window, operand 1, single buffered']
    #allocation6 [shape = 's32[1]{0}', space=sflag, size = 0x4, scoped, tag = 'scoped memory for tpu_custom_call.1']
    #allocation7 [shape = 'u8[4096]{0}', space=vmem, size = 0x1000, scoped, tag = 'output window, operand 0, single buffered']
    %7 = vsyncpa [#allocation3], 0
    %8 = vsyncpa [#allocation6], 0
    %9 = vsyncpa [#allocation4], 0
    // Predicated region
    $region2: #{tpu_custom_call.1} parent=1 // pred_check
      _
    $region3: #{tpu_custom_call.1} parent=1 // pred_check_branch
      %11 = sbr.rel (0) target = $region5
    $region4: #{tpu_custom_call.1} parent=1 // pred_region
      %s12 = sadd.s32 0, 0
      %p13 = scmp.lt.s32.totalorder %s12, 0
      %s14 = scalar_select %p13, %s12, 0
      %s15 = smul.u32 2, %s14
      %s17 = ssub.s32 256, 256
      %18 = vsyncadd [#allocation3], %s17
      %s19 = smul.addr %s15, 128
      %s20 = scalar_lea.hbm %s0, %s19
      %s21 = sshll.u32 [#allocation2], 4
      %s22 = int_to_ptr.vmem [resolvable:$true] %s21
      %27 = dma.hbm_to_vmem [thread:$0]  %s20, 256, %s22, [#allocation3], 128, 128, 8
    $region5: #{tpu_custom_call.1} parent=1 // pred_fallthru
      _
    // Predicated region
    $region6: #{tpu_custom_call.1} parent=1 // pred_check
      _
    $region7: #{tpu_custom_call.1} parent=1 // pred_check_branch
      %29 = sbr.rel (0) target = $region9
    $region8: #{tpu_custom_call.1} parent=1 // pred_region
      %s30 = sadd.s32 0, 0
      %p31 = scmp.lt.s32.totalorder %s30, 0
      %s32 = scalar_select %p31, %s30, 0
      %s33 = smul.u32 2, %s32
      %s35 = ssub.s32 256, 256
      %36 = vsyncadd [#allocation6], %s35
      %s37 = smul.addr %s33, 128
      %s38 = scalar_lea.hbm %s1, %s37
      %s39 = sshll.u32 [#allocation5], 4
      %s40 = int_to_ptr.vmem [resolvable:$true] %s39
      %45 = dma.hbm_to_vmem [thread:$0]  %s38, 256, %s40, [#allocation6], 128, 128, 8
    $region9: #{tpu_custom_call.1} parent=1 // pred_fallthru
      _
    // Predicated region
    $region10: #{tpu_custom_call.1} parent=1 // pred_check
      _
    $region11: #{tpu_custom_call.1} parent=1 // pred_check_branch
      %47 = sbr.rel (0) target = $region13
    $region12: #{tpu_custom_call.1} parent=1 // pred_region
      %48 = dma.done [#allocation3], 256
    $region13: #{tpu_custom_call.1} parent=1 // pred_fallthru
      _
    // Predicated region
    $region14: #{tpu_custom_call.1} parent=1 // pred_check
      _
    $region15: #{tpu_custom_call.1} parent=1 // pred_check_branch
      %50 = sbr.rel (0) target = $region17
    $region16: #{tpu_custom_call.1} parent=1 // pred_region
      %51 = dma.done [#allocation6], 256
    $region17: #{tpu_custom_call.1} parent=1 // pred_fallthru
      _
    %s52 = sadd.s32 0, 0
    %p53 = scmp.lt.s32.totalorder %s52, 0
    %s54 = scalar_select %p53, %s52, 0
    %s55 = smul.u32 2, %s54
    %s56 = sadd.s32 0, 0
    %p57 = scmp.lt.s32.totalorder %s56, 0
    %s58 = scalar_select %p57, %s56, 0
    %s59 = smul.u32 2, %s58
    %p60 = scmp.eq.s32.totalorder 0, 0
    // Predicated region
    $region18: #{tpu_custom_call.1} parent=1 // pred_check
      %p61 = pneg %p60
    $region19: #{tpu_custom_call.1} parent=1 // pred_check_branch
      %63 = sbr.rel (%p61) target = $region21
    $region20: #{tpu_custom_call.1} parent=1 // pred_region
      %64 = vst [vmem:[#allocation7] sm:$0xff] 0.0
    $region21: #{tpu_custom_call.1} parent=1 // pred_fallthru
      _
    %v65 = vld [vmem:[#allocation2] sm:$0xff]
    %v66 = vld [vmem:[#allocation2 + $0x8] sm:$0xff]
    %v67 = vld [vmem:[#allocation5] sm:$0xff]
    %v68 = vld [vmem:[#allocation5 + $0x8] sm:$0xff]
    %v69 = vand.u32 2147483647, %v65
    %v70 = vand.u32 2147483647, %v66
    %v71 = vsub.f32 0.0, %v69
    %v72 = vsub.f32 0.0, %v70
    %v73 = vmul.f32 %v71, 1.442695
    %v74 = vpow.pop %v73
    %v75 = vmul.f32 %v72, 1.442695
    %v76 = vpow.pop %v75
    %v77 = vadd.f32 %v74, 1.0
    %v78 = vadd.f32 %v76, 1.0
    %v79 = vrcp.pop %v77
    %v80 = vrcp.pop %v78
    %v81 = vmax.f32 %v65, 0.0
    %v82 = vmax.f32 %v66, 0.0
    %v83 = vmul.f32 %v65, %v67
    %v84 = vmul.f32 %v66, %v68
    %v85 = vsub.f32 %v81, %v83
    %v86 = vsub.f32 %v82, %v84
    %v87 = vadd.f32 %v74, 1.0
    %v88 = vlog2.pop %v87
    %v89 = vmul.f32 %v88, 0.6931472
    %v90 = vmul.f32 -0.5, %v74
    %v91 = vadd.f32 %v90, 1.0
    %v92 = vmul.f32 %v91, %v74
    %v93 = vand.u32 2147483647, %v74
    %vm94 = vcmp.lt.f32.partialorder %v93, 0.0004427343
    %v95 = vsel %vm94, %v92, %v89
    %v96 = vadd.f32 %v76, 1.0
    %v97 = vlog2.pop %v96
    %v98 = vmul.f32 %v97, 0.6931472
    %v99 = vmul.f32 -0.5, %v76
    %v100 = vadd.f32 %v99, 1.0
    %v101 = vmul.f32 %v100, %v76
    %v102 = vand.u32 2147483647, %v76
    %vm103 = vcmp.lt.f32.partialorder %v102, 0.0004427343
    %v104 = vsel %vm103, %v101, %v98
    %v105 = vadd.f32 %v85, %v95
    %v106 = vadd.f32 %v86, %v104
    %vm107 = vcmp.ge.f32.partialorder %v65, 0.0
    %vm108 = vcmp.ge.f32.partialorder %v66, 0.0
    %v109 = vmul.f32 %v74, %v79
    %v110 = vmul.f32 %v76, %v80
    %v111 = vsel %vm107, %v79, %v109
    %v112 = vsel %vm108, %v80, %v110
    %v113 = vadd.f32 %v111, %v67
    %v114 = vadd.f32 %v112, %v68
    %v115 = vmul.f32 %v67, %v111
    %v116 = vmul.f32 %v68, %v112
    %v117 = vmul.f32 %v115, 2.0
    %v118 = vmul.f32 %v116, 2.0
    %v119 = vsub.f32 %v113, %v117
    %v120 = vsub.f32 %v114, %v118
    %v121 = vmax.f32 %v119, 0.0
    %v122 = vmax.f32 %v120, 0.0
    %v123 = vmul.f32 %v67, -0.5
    %v124 = vmul.f32 %v68, -0.5
    %v125 = vadd.f32 %v123, 0.75
    %v126 = vadd.f32 %v124, 0.75
    %v127 = vrsqrt.pop %v121
    %v128 = vmul.f32 %v121, %v127
    %vm129 = vcmp.eq.f32.partialorder %v121, inf
    %v130 = vsel %vm129, %v121, %v128
    %vm131 = vcmp.eq.f32.partialorder %v121, 0.0
    %v132 = vand.u32 %v121, 2147483648
    %v133 = vsel %vm131, %v132, %v130
    %v134 = vrsqrt.pop %v122
    %v135 = vmul.f32 %v122, %v134
    %vm136 = vcmp.eq.f32.partialorder %v122, inf
    %v137 = vsel %vm136, %v122, %v135
    %vm138 = vcmp.eq.f32.partialorder %v122, 0.0
    %v139 = vand.u32 %v122, 2147483648
    %v140 = vsel %vm138, %v139, %v137
    %v141 = vmul.f32 %v121, %v133
    %v142 = vmul.f32 %v122, %v140
    %v143 = vmul.f32 %v105, %v125
    %v144 = vmul.f32 %v106, %v126
    %v145 = vmul.f32 %v143, %v141
    %v146 = vmul.f32 %v144, %v142
    %v147 = vld [vmem:[#allocation7] sm:$0xff]
    %v148 = vadd.f32 %v145, %v146
    %v149 = vadd.f32 %v147, %v148
    %150 = vst [vmem:[#allocation7] sm:$0xff] %v149
    // Predicated region
    $region22: #{tpu_custom_call.1} parent=1 // pred_check
      _
    $region23: #{tpu_custom_call.1} parent=1 // pred_check_branch
      %152 = sbr.rel (0) target = $region25
    $region24: #{tpu_custom_call.1} parent=1 // pred_region
      %s154 = ssub.s32 128, 128
      %155 = vsyncadd [#allocation4], %s154
      %s157 = sshll.u32 [#allocation7], 4
      %s158 = int_to_ptr.vmem [resolvable:$true] %s157
      %160 = dma.vmem_to_hbm [thread:$0]  %s158, 128, %s2, [#allocation4]
    $region25: #{tpu_custom_call.1} parent=1 // pred_fallthru
      _
    // Predicated region
    $region26: #{tpu_custom_call.1} parent=1 // pred_check
      _
    $region27: #{tpu_custom_call.1} parent=1 // pred_check_branch
      %162 = sbr.rel (0) target = $region29
    $region28: #{tpu_custom_call.1} parent=1 // pred_region
      %163 = dma.done [#allocation4], 128
    $region29: #{tpu_custom_call.1} parent=1 // pred_fallthru
      _
    %164 = vsyncpa [#allocation3], 1
    %165 = vsyncpa [#allocation6], 1
    %166 = vsyncpa [#allocation4], 1

</llo_original>
